<compile_context>
chip_gen: v6e
topology: v6e:2x2x1
jax: 0.10.0
libtpu: 0.0.40
codegen_flags: <defaults>
</compile_context>

<pallas_src>
import jax
import jax.numpy as jnp
from jax import lax
from jax.experimental import pallas as pl
from jax.experimental.pallas import tpu as pltpu

LANE = 128      # vreg lane width (fast axis; batch lives here)
SUBLANE = 8     # vreg sublane width


def _round_up(n, m):
    return ((n + m - 1) // m) * m


def _cdiv(a, b):
    return (a + b - 1) // b


def mlp_kernel(x_ref, w1_ref, b1_ref, w2_ref, b2_ref, w3_ref, b3_ref, o_ref):
    """Feature-major MLP tile.

    x_ref : [in_pad, tb]   f32   (rows >= in_dim are zero padding)
    w1_ref: [H1, in_dim]   f32   b1_ref: [H1, 1]      f32
    w2_ref: [H2, H1]       mxu   b2_ref: [H2, 1]      f32
    w3_ref: [out_pad, H2]  mxu   b3_ref: [out_pad, 1] f32
    o_ref : [out_pad, tb]  f32   (lane-dense, unmasked store)
    """
    in_dim = w1_ref.shape[1]
    mxu_dtype = w2_ref.dtype

    # ---- d1: tiny-K contraction as broadcast VPU FMAs (f32, no MXU push/pop for K=2) ----
    if in_dim <= SUBLANE:
        h1 = b1_ref[...] + w1_ref[:, 0:1] * x_ref[0:1, :]
        for k in range(1, in_dim):
            h1 = h1 + w1_ref[:, k:k + 1] * x_ref[k:k + 1, :]
    else:
        h1 = jnp.dot(w1_ref[...], x_ref[0:in_dim, :],
                     preferred_element_type=jnp.float32) + b1_ref[...]

    # relu(d1) -> (x*x)*(x*x)  == relu^4, f32 elementwise chain
    h1 = jnp.maximum(h1, 0.0)
    h1 = h1 * h1
    h1 = h1 * h1

    # ---- d2 (MXU, K=64, N=tb lane-dense), relu(.)^2 ----
    h2 = jnp.dot(w2_ref[...], h1.astype(mxu_dtype),
                 preferred_element_type=jnp.float32) + b2_ref[...]
    h2 = jnp.maximum(h2, 0.0)
    h2 = h2 * h2

    # ---- d3 (MXU, K=128, N=tb) -> lane-dense [out_pad, tb] slab, unmasked vst ----
    out = jnp.dot(w3_ref[...], h2.astype(mxu_dtype),
                  preferred_element_type=jnp.float32) + b3_ref[...]
    o_ref[...] = out.astype(o_ref.dtype)


def prepare_params(params, mxu_dtype=jnp.bfloat16):
    """One-time conversion from PyTorch layout (W=[out,in], b=[out]) to kernel layout.

    Weights keep the PyTorch [out, in] orientation (that IS the feature-major left operand);
    biases become [out, 1] columns; layer-3 weight/bias are zero-padded to a sublane multiple.
    w2/w3 are stored in `mxu_dtype` (bf16 by default -> native MXU path on v6e/v7x).
    """
    (w1, b1), (w2, b2), (w3, b3) = params["d1"], params["d2"], params["d3"]
    out_dim = int(w3.shape[0])
    out_pad = _round_up(out_dim, SUBLANE)

    w3p = jnp.zeros((out_pad, w3.shape[1]), mxu_dtype).at[:out_dim, :].set(
        jnp.asarray(w3, mxu_dtype))
    b3p = jnp.zeros((out_pad, 1), jnp.float32).at[:out_dim, 0].set(
        jnp.asarray(b3, jnp.float32))

    kparams = {
        "w1": jnp.asarray(w1, jnp.float32),             # [H1, in]
        "b1": jnp.asarray(b1, jnp.float32)[:, None],    # [H1, 1]
        "w2": jnp.asarray(w2, mxu_dtype),               # [H2, H1]
        "b2": jnp.asarray(b2, jnp.float32)[:, None],    # [H2, 1]
        "w3": w3p,                                       # [out_pad, H2]
        "b3": b3p,                                       # [out_pad, 1]
    }
    return kparams, out_dim


def neural_network_forward(x, kparams, out_dim, tb_max=4096):
    """x: [B, in_dim] float32. kparams: output of prepare_params. Returns [B, out_dim] f32."""
    w1, b1 = kparams["w1"], kparams["b1"]
    w2, b2 = kparams["w2"], kparams["b2"]
    w3, b3 = kparams["w3"], kparams["b3"]

    B, in_dim = x.shape
    h1_dim = w1.shape[0]
    h2_dim = w2.shape[0]
    out_pad = w3.shape[0]
    in_pad = _round_up(in_dim, SUBLANE)

    # ---- batch-tile (lane axis) selection: big tiles, small padding, grid >= 2 when possible ----
    tb_max = max(LANE, (int(tb_max) // LANE) * LANE)
    Bp0 = _round_up(B, LANE)
    n_blocks = max(1, _cdiv(Bp0, tb_max))
    if Bp0 >= 2 * LANE:
        n_blocks = max(n_blocks, 2)        # v7x: shard the 'parallel' axis across both TensorCores
    tb = _round_up(_cdiv(Bp0, n_blocks), LANE)
    Bp = n_blocks * tb                     # padding waste <= n_blocks*LANE rows

    # Batch-on-lanes input slab: xT zero-padded to [in_pad, Bp] (done once in the wrapper).
    xt = jnp.zeros((in_pad, Bp), jnp.float32).at[:in_dim, :B].set(x.T)

    # ---- explicit VMEM budget (v7x: 64 MiB physical, 32 MiB scoped default) ----
    per_step = 4 * tb * (2 * in_pad + 2 * out_pad + 3 * h1_dim + 3 * h2_dim)
    w_bytes = sum(int(a.size) * int(a.dtype.itemsize) for a in (w1, b1, w2, b2, w3, b3))
    vmem_limit = min(max(2 * per_step + 4 * w_bytes + (4 << 20), 32 << 20), 48 << 20)

    cost = pl.CostEstimate(
        flops=2 * Bp * (in_dim * h1_dim + h1_dim * h2_dim + h2_dim * out_pad),
        transcendentals=0,
        bytes_accessed=4 * Bp * (in_pad + out_pad) + w_bytes,
    )

    out_t = pl.pallas_call(
        mlp_kernel,
        out_shape=jax.ShapeDtypeStruct((out_pad, Bp), jnp.float32),
        grid=(n_blocks,),
        in_specs=[
            pl.BlockSpec((in_pad, tb), lambda i: (0, i)),       # xT: tiled on batch (lanes)
            pl.BlockSpec((h1_dim, in_dim), lambda i: (0, 0)),   # w1 (replicated, f32)
            pl.BlockSpec((h1_dim, 1), lambda i: (0, 0)),        # b1 column
            pl.BlockSpec((h2_dim, h1_dim), lambda i: (0, 0)),   # w2 (mxu dtype)
            pl.BlockSpec((h2_dim, 1), lambda i: (0, 0)),        # b2 column
            pl.BlockSpec((out_pad, h2_dim), lambda i: (0, 0)),  # w3 (row-padded, mxu dtype)
            pl.BlockSpec((out_pad, 1), lambda i: (0, 0)),       # b3 column (row-padded)
        ],
        out_specs=pl.BlockSpec((out_pad, tb), lambda i: (0, i)),
        compiler_params=pltpu.CompilerParams(
            dimension_semantics=("parallel",),
            vmem_limit_bytes=vmem_limit,
        ),
        cost_estimate=cost,
    )(xt, w1, b1, w2, b2, w3, b3)

    # outT [out_pad, Bp] -> [B, out_dim]
    return out_t[:out_dim, :B].T


def init_params(key, net_size=(2, 64, 128, 2)):
    """Deterministic init mimicking PyTorch nn.Linear default: U(-1/sqrt(fan_in), 1/sqrt(fan_in))."""
    params = {}
    names = ["d1", "d2", "d3"]
    for i, name in enumerate(names):
        fan_in, fan_out = net_size[i], net_size[i + 1]
        key, kw, kb = jax.random.split(key, 3)
        bound = 1.0 / (fan_in ** 0.5)
        w = jax.random.uniform(kw, (fan_out, fan_in), jnp.float32, -bound, bound)
        b = jax.random.uniform(kb, (fan_out,), jnp.float32, -bound, bound)
        params[name] = (w, b)
    return params


def reference_forward(x, params):
    """Pure-JAX f32 reference of the PyTorch forward."""
    (w1, b1), (w2, b2), (w3, b3) = params["d1"], params["d2"], params["d3"]
    h = x @ w1.T + b1
    h = jnp.maximum(h, 0.0)
    h = h * h
    h = h * h
    h = h @ w2.T + b2
    h = jnp.maximum(h, 0.0)
    h = h * h
    return h @ w3.T + b3


def reference_forward_matched(x, params, mxu_dtype):
    """Pure-JAX reference mirroring the kernel's mixed precision (bf16 MXU inputs, f32 math)."""
    (w1, b1), (w2, b2), (w3, b3) = params["d1"], params["d2"], params["d3"]
    h = jnp.dot(x, w1.T, precision=lax.Precision.HIGHEST) + b1
    h = jnp.maximum(h, 0.0)
    h = h * h
    h = h * h
    h = jnp.dot(h.astype(mxu_dtype), w2.T.astype(mxu_dtype),
                preferred_element_type=jnp.float32) + b2
    h = jnp.maximum(h, 0.0)
    h = h * h
    return jnp.dot(h.astype(mxu_dtype), w3.T.astype(mxu_dtype),
                   preferred_element_type=jnp.float32) + b3


if __name__ == "__main__":
    key = jax.random.PRNGKey(0)
    key, kx = jax.random.split(key)

    net_size = (2, 64, 128, 2)
    batch = 8
    x = jax.random.normal(kx, (batch, net_size[0]), jnp.float32)
    params = init_params(key, net_size)

    ref = reference_forward(x, params)
    fwd = jax.jit(neural_network_forward, static_argnames=("out_dim", "tb_max"))

    # Exact-semantics f32 MXU path.
    kp_f32, out_dim = prepare_params(params, mxu_dtype=jnp.float32)
    out_f32 = jax.block_until_ready(fwd(x, kp_f32, out_dim=out_dim))
    assert out_f32.shape == (batch, net_size[-1])
    assert jnp.allclose(out_f32, ref, atol=2e-4, rtol=2e-4), "f32 path mismatch vs JAX reference"

    # Default bf16-MXU path (perf path for v6e/v7x), checked against a numerics-matched reference.
    kp_bf16, _ = prepare_params(params)            # mxu_dtype = jnp.bfloat16
    out_bf16 = jax.block_until_ready(fwd(x, kp_bf16, out_dim=out_dim))
    ref_bf16 = reference_forward_matched(x, params, jnp.bfloat16)
    assert out_bf16.shape == (batch, net_size[-1])
    assert jnp.allclose(out_bf16, ref_bf16, atol=5e-3, rtol=5e-3), \
        "bf16 path mismatch vs matched reference"

    print("KERNEL_OK")
</pallas_src>

<mosaic_0001>
module attributes {stable_mosaic.version = 11 : i64} {
  func.func @mlp_kernel(%arg0: i32, %arg1: memref<8x128xf32, #tpu.memory_space<vmem>>, %arg2: memref<64x2xf32, #tpu.memory_space<vmem>>, %arg3: memref<64x1xf32, #tpu.memory_space<vmem>>, %arg4: memref<128x64xf32, #tpu.memory_space<vmem>>, %arg5: memref<128x1xf32, #tpu.memory_space<vmem>>, %arg6: memref<8x128xf32, #tpu.memory_space<vmem>>, %arg7: memref<8x1xf32, #tpu.memory_space<vmem>>, %arg8: memref<8x128xf32, #tpu.memory_space<vmem>>) attributes {dimension_semantics = [#tpu.dimension_semantics<parallel>], iteration_bounds = array<i64: 1>, scalar_prefetch = 0 : i64, scratch_operands = 0 : i64, tpu.core_type = #tpu.core_type<tc>, window_params = [{transform_indices = @transform_0, window_bounds = array<i64: 8, 128>}, {pipeline_mode = #tpu.pipeline_mode<synchronous>, transform_indices = @transform_1, window_bounds = array<i64: 64, 2>}, {pipeline_mode = #tpu.pipeline_mode<synchronous>, transform_indices = @transform_2, window_bounds = array<i64: 64, 1>}, {pipeline_mode = #tpu.pipeline_mode<synchronous>, transform_indices = @transform_3, window_bounds = array<i64: 128, 64>}, {pipeline_mode = #tpu.pipeline_mode<synchronous>, transform_indices = @transform_4, window_bounds = array<i64: 128, 1>}, {pipeline_mode = #tpu.pipeline_mode<synchronous>, transform_indices = @transform_5, window_bounds = array<i64: 8, 128>}, {pipeline_mode = #tpu.pipeline_mode<synchronous>, transform_indices = @transform_6, window_bounds = array<i64: 8, 1>}, {transform_indices = @transform_7, window_bounds = array<i64: 8, 128>}]} {
    %c0 = arith.constant 0 : index
    %c0_0 = arith.constant 0 : index
    %0 = vector.load %arg3[%c0, %c0_0] : memref<64x1xf32, #tpu.memory_space<vmem>>, vector<64x1xf32>
    %c0_1 = arith.constant 0 : index
    %c0_2 = arith.constant 0 : index
    %1 = vector.load %arg2[%c0_1, %c0_2] : memref<64x2xf32, #tpu.memory_space<vmem>>, vector<64x1xf32>
    %c0_3 = arith.constant 0 : index
    %c0_4 = arith.constant 0 : index
    %2 = vector.load %arg1[%c0_3, %c0_4] : memref<8x128xf32, #tpu.memory_space<vmem>>, vector<1x128xf32>
    %3 = vector.broadcast %1 : vector<64x1xf32> to vector<64x128xf32>
    %4 = vector.broadcast %2 : vector<1x128xf32> to vector<64x128xf32>
    %5 = arith.mulf %3, %4 : vector<64x128xf32>
    %6 = vector.broadcast %0 : vector<64x1xf32> to vector<64x128xf32>
    %7 = arith.addf %6, %5 : vector<64x128xf32>
    %c0_5 = arith.constant 0 : index
    %c1 = arith.constant 1 : index
    %8 = vector.load %arg2[%c0_5, %c1] : memref<64x2xf32, #tpu.memory_space<vmem>>, vector<64x1xf32>
    %c1_6 = arith.constant 1 : index
    %c0_7 = arith.constant 0 : index
    %9 = vector.load %arg1[%c1_6, %c0_7] : memref<8x128xf32, #tpu.memory_space<vmem>>, vector<1x128xf32>
    %10 = vector.broadcast %8 : vector<64x1xf32> to vector<64x128xf32>
    %11 = vector.broadcast %9 : vector<1x128xf32> to vector<64x128xf32>
    %12 = arith.mulf %10, %11 : vector<64x128xf32>
    %13 = arith.addf %7, %12 : vector<64x128xf32>
    %cst = arith.constant 0.000000e+00 : f32
    %14 = vector.broadcast %cst : f32 to vector<64x128xf32>
    %15 = arith.maximumf %13, %14 : vector<64x128xf32>
    %16 = arith.mulf %15, %15 : vector<64x128xf32>
    %17 = arith.mulf %16, %16 : vector<64x128xf32>
    %c0_8 = arith.constant 0 : index
    %c0_9 = arith.constant 0 : index
    %18 = vector.load %arg4[%c0_8, %c0_9] : memref<128x64xf32, #tpu.memory_space<vmem>>, vector<128x64xf32>
    %cst_10 = arith.constant dense<0.000000e+00> : vector<128x128xf32>
    %19 = tpu.matmul %18, %17, %cst_10 {dimension_numbers = #tpu.dot_dimension_numbers<[1], [0], [0], [1], [0, 0, 1, 1], [], []>} : vector<128x64xf32>, vector<64x128xf32>, vector<128x128xf32> -> vector<128x128xf32>
    %c0_11 = arith.constant 0 : index
    %c0_12 = arith.constant 0 : index
    %20 = vector.load %arg5[%c0_11, %c0_12] : memref<128x1xf32, #tpu.memory_space<vmem>>, vector<128x1xf32>
    %21 = vector.broadcast %20 : vector<128x1xf32> to vector<128x128xf32>
    %22 = arith.addf %19, %21 : vector<128x128xf32>
    %cst_13 = arith.constant 0.000000e+00 : f32
    %23 = vector.broadcast %cst_13 : f32 to vector<128x128xf32>
    %24 = arith.maximumf %22, %23 : vector<128x128xf32>
    %25 = arith.mulf %24, %24 : vector<128x128xf32>
    %c0_14 = arith.constant 0 : index
    %c0_15 = arith.constant 0 : index
    %26 = vector.load %arg6[%c0_14, %c0_15] : memref<8x128xf32, #tpu.memory_space<vmem>>, vector<8x128xf32>
    %cst_16 = arith.constant dense<0.000000e+00> : vector<8x128xf32>
    %27 = tpu.matmul %26, %25, %cst_16 {dimension_numbers = #tpu.dot_dimension_numbers<[1], [0], [0], [1], [0, 0, 1, 1], [], []>} : vector<8x128xf32>, vector<128x128xf32>, vector<8x128xf32> -> vector<8x128xf32>
    %c0_17 = arith.constant 0 : index
    %c0_18 = arith.constant 0 : index
    %28 = vector.load %arg7[%c0_17, %c0_18] : memref<8x1xf32, #tpu.memory_space<vmem>>, vector<8x1xf32>
    %29 = vector.broadcast %28 : vector<8x1xf32> to vector<8x128xf32>
    %30 = arith.addf %27, %29 : vector<8x128xf32>
    %c0_19 = arith.constant 0 : index
    %c0_20 = arith.constant 0 : index
    %31 = vector.load %arg8[%c0_19, %c0_20] : memref<8x128xf32, #tpu.memory_space<vmem>>, vector<8x128xf32>
    tpu.vector_store %arg8[%c0_19, %c0_20], %30 {strides = array<i32>} : memref<8x128xf32, #tpu.memory_space<vmem>>, vector<8x128xf32>,
    return
  }
  func.func @transform_0(%arg0: i32) -> (i32, i32) {
    %c0_i32 = arith.constant 0 : i32
    %c0_i32_0 = arith.constant 0 : i32
    return %c0_i32, %arg0 : i32, i32
  }
  func.func @transform_1(%arg0: i32) -> (i32, i32) {
    %c0_i32 = arith.constant 0 : i32
    %c0_i32_0 = arith.constant 0 : i32
    %c0_i32_1 = arith.constant 0 : i32
    return %c0_i32, %c0_i32_0 : i32, i32
  }
  func.func @transform_2(%arg0: i32) -> (i32, i32) {
    %c0_i32 = arith.constant 0 : i32
    %c0_i32_0 = arith.constant 0 : i32
    %c0_i32_1 = arith.constant 0 : i32
    return %c0_i32, %c0_i32_0 : i32, i32
  }
  func.func @transform_3(%arg0: i32) -> (i32, i32) {
    %c0_i32 = arith.constant 0 : i32
    %c0_i32_0 = arith.constant 0 : i32
    %c0_i32_1 = arith.constant 0 : i32
    return %c0_i32, %c0_i32_0 : i32, i32
  }
  func.func @transform_4(%arg0: i32) -> (i32, i32) {
    %c0_i32 = arith.constant 0 : i32
    %c0_i32_0 = arith.constant 0 : i32
    %c0_i32_1 = arith.constant 0 : i32
    return %c0_i32, %c0_i32_0 : i32, i32
  }
  func.func @transform_5(%arg0: i32) -> (i32, i32) {
    %c0_i32 = arith.constant 0 : i32
    %c0_i32_0 = arith.constant 0 : i32
    %c0_i32_1 = arith.constant 0 : i32
    return %c0_i32, %c0_i32_0 : i32, i32
  }
  func.func @transform_6(%arg0: i32) -> (i32, i32) {
    %c0_i32 = arith.constant 0 : i32
    %c0_i32_0 = arith.constant 0 : i32
    %c0_i32_1 = arith.constant 0 : i32
    return %c0_i32, %c0_i32_0 : i32, i32
  }
  func.func @transform_7(%arg0: i32) -> (i32, i32) {
    %c0_i32 = arith.constant 0 : i32
    %c0_i32_0 = arith.constant 0 : i32
    return %c0_i32, %arg0 : i32, i32
  }
}

</mosaic_0001>

<llo_original>
// kernel: neural_network_forward.1
$region0: #{neural_network_forward.1}
  #allocation0 [shape = 'u32[]', space=smem, size = 0x4, offset = 0x4, fixed_abs, tag = 'smem constant byte address 0x4 - core index']
  #allocation1 [shape = 'u32[144,128]{1,0:T(1,128)}', space=vmem, size = 0x12000, scoped, tag = 'internal scratch']
  %s0 = inlined_call_operand.vmem [shape: f32[8,128], index: 0, kind: input, shape index: {}]
  %s1 = inlined_call_operand.vmem [shape: f32[64,2], index: 1, kind: input, shape index: {}]
  %s2 = inlined_call_operand.vmem [shape: f32[64,1], index: 2, kind: input, shape index: {}]
  %s3 = inlined_call_operand.vmem [shape: f32[128,64], index: 3, kind: input, shape index: {}]
  %s4 = inlined_call_operand.vmem [shape: f32[128,1], index: 4, kind: input, shape index: {}]
  %s5 = inlined_call_operand.vmem [shape: f32[8,128], index: 5, kind: input, shape index: {}]
  %s6 = inlined_call_operand.vmem [shape: f32[8,1], index: 6, kind: input, shape index: {}]
  %s7 = inlined_call_operand.vmem [shape: f32[8,128], index: 7, kind: output, shape index: {}]
  %s8 = sld [smem:[#allocation0]]
  $region38: #{neural_network_forward.1} parent=0
    _
  %s10 = ssub.s32 1, %s8
  %s11 = scalar_select 0, %s10, %s8
  // Predicated region
  $region2: #{neural_network_forward.1} parent=0 // pred_check
    _
  $region3: #{neural_network_forward.1} parent=0 // pred_check_branch
    %13 = sbr.rel (0) target = $region5
  $region4: #{neural_network_forward.1} parent=0 // pred_region
    _
  $region5: #{neural_network_forward.1} parent=0 // pred_fallthru
    _
  // Predicated region
  $region6: #{neural_network_forward.1} parent=0 // pred_check
    _
  $region7: #{neural_network_forward.1} parent=0 // pred_check_branch
    %15 = sbr.rel (0) target = $region9
  $region8: #{neural_network_forward.1} parent=0 // pred_region
    _
  $region9: #{neural_network_forward.1} parent=0 // pred_fallthru
    _
  // Predicated region
  $region10: #{neural_network_forward.1} parent=0 // pred_check
    _
  $region11: #{neural_network_forward.1} parent=0 // pred_check_branch
    %17 = sbr.rel (0) target = $region13
  $region12: #{neural_network_forward.1} parent=0 // pred_region
    _
  $region13: #{neural_network_forward.1} parent=0 // pred_fallthru
    _
  // Predicated region
  $region14: #{neural_network_forward.1} parent=0 // pred_check
    _
  $region15: #{neural_network_forward.1} parent=0 // pred_check_branch
    %19 = sbr.rel (0) target = $region17
  $region16: #{neural_network_forward.1} parent=0 // pred_region
    _
  $region17: #{neural_network_forward.1} parent=0 // pred_fallthru
    _
  // Predicated region
  $region18: #{neural_network_forward.1} parent=0 // pred_check
    _
  $region19: #{neural_network_forward.1} parent=0 // pred_check_branch
    %21 = sbr.rel (0) target = $region21
  $region20: #{neural_network_forward.1} parent=0 // pred_region
    _
  $region21: #{neural_network_forward.1} parent=0 // pred_fallthru
    _
  // Predicated region
  $region22: #{neural_network_forward.1} parent=0 // pred_check
    _
  $region23: #{neural_network_forward.1} parent=0 // pred_check_branch
    %23 = sbr.rel (0) target = $region25
  $region24: #{neural_network_forward.1} parent=0 // pred_region
    _
  $region25: #{neural_network_forward.1} parent=0 // pred_fallthru
    _
  // Predicated region
  $region26: #{neural_network_forward.1} parent=0 // pred_check
    _
  $region27: #{neural_network_forward.1} parent=0 // pred_check_branch
    %25 = sbr.rel (0) target = $region29
  $region28: #{neural_network_forward.1} parent=0 // pred_region
    _
  $region29: #{neural_network_forward.1} parent=0 // pred_fallthru
    _
  %v26 = vld [vmem:[%s2] sm:$0xff]
  %v27 = vld [vmem:[%s2 + $0x8] sm:$0xff]
  %v28 = vld [vmem:[%s2 + $0x10] sm:$0xff]
  %v29 = vld [vmem:[%s2 + $0x18] sm:$0xff]
  %v30 = vld [vmem:[%s2 + $0x20] sm:$0xff]
  %v31 = vld [vmem:[%s2 + $0x28] sm:$0xff]
  %v32 = vld [vmem:[%s2 + $0x30] sm:$0xff]
  %v33 = vld [vmem:[%s2 + $0x38] sm:$0xff]
  %v34 = vld [vmem:[%s1] sm:$0xff]
  %v35 = vld [vmem:[%s1 + $0x8] sm:$0xff]
  %v36 = vld [vmem:[%s1 + $0x10] sm:$0xff]
  %v37 = vld [vmem:[%s1 + $0x18] sm:$0xff]
  %v38 = vld [vmem:[%s1 + $0x20] sm:$0xff]
  %v39 = vld [vmem:[%s1 + $0x28] sm:$0xff]
  %v40 = vld [vmem:[%s1 + $0x30] sm:$0xff]
  %v41 = vld [vmem:[%s1 + $0x38] sm:$0xff]
  %v42 = vld [vmem:[%s0] sm:$0x1]
  %44 = vset.pattern.permute.xlu0 0
  %45 = vperm.xlu0 %44, %v34
  %v46 = vpop.permute.xlu0 %45
  %49 = vset.pattern.permute.xlu0 0
  %50 = vperm.xlu0 %49, %v35
  %v51 = vpop.permute.xlu0 %50
  %54 = vset.pattern.permute.xlu0 0
  %55 = vperm.xlu0 %54, %v36
  %v56 = vpop.permute.xlu0 %55
  %59 = vset.pattern.permute.xlu0 0
  %60 = vperm.xlu0 %59, %v37
  %v61 = vpop.permute.xlu0 %60
  %64 = vset.pattern.permute.xlu0 0
  %65 = vperm.xlu0 %64, %v38
  %v66 = vpop.permute.xlu0 %65
  %69 = vset.pattern.permute.xlu0 0
  %70 = vperm.xlu0 %69, %v39
  %v71 = vpop.permute.xlu0 %70
  %74 = vset.pattern.permute.xlu0 0
  %75 = vperm.xlu0 %74, %v40
  %v76 = vpop.permute.xlu0 %75
  %79 = vset.pattern.permute.xlu0 0
  %80 = vperm.xlu0 %79, %v41
  %v81 = vpop.permute.xlu0 %80
  %v83 = vlaneseq
  %v84 = vshrl.u32 %v83, 7
  %v85 = vsub.s32 0, %v84
  %v86 = vrot.slane %v42, %v85
  %v87 = vmul.f32 %v46, %v86
  %v88 = vmul.f32 %v51, %v86
  %v89 = vmul.f32 %v56, %v86
  %v90 = vmul.f32 %v61, %v86
  %v91 = vmul.f32 %v66, %v86
  %v92 = vmul.f32 %v71, %v86
  %v93 = vmul.f32 %v76, %v86
  %v94 = vmul.f32 %v81, %v86
  %96 = vset.pattern.permute.xlu0 0
  %97 = vperm.xlu0 %96, %v26
  %v98 = vpop.permute.xlu0 %97
  %101 = vset.pattern.permute.xlu0 0
  %102 = vperm.xlu0 %101, %v27
  %v103 = vpop.permute.xlu0 %102
  %106 = vset.pattern.permute.xlu0 0
  %107 = vperm.xlu0 %106, %v28
  %v108 = vpop.permute.xlu0 %107
  %111 = vset.pattern.permute.xlu0 0
  %112 = vperm.xlu0 %111, %v29
  %v113 = vpop.permute.xlu0 %112
  %116 = vset.pattern.permute.xlu0 0
  %117 = vperm.xlu0 %116, %v30
  %v118 = vpop.permute.xlu0 %117
  %121 = vset.pattern.permute.xlu0 0
  %122 = vperm.xlu0 %121, %v31
  %v123 = vpop.permute.xlu0 %122
  %126 = vset.pattern.permute.xlu0 0
  %127 = vperm.xlu0 %126, %v32
  %v128 = vpop.permute.xlu0 %127
  %131 = vset.pattern.permute.xlu0 0
  %132 = vperm.xlu0 %131, %v33
  %v133 = vpop.permute.xlu0 %132
  %v135 = vadd.f32 %v98, %v87
  %v136 = vadd.f32 %v103, %v88
  %v137 = vadd.f32 %v108, %v89
  %v138 = vadd.f32 %v113, %v90
  %v139 = vadd.f32 %v118, %v91
  %v140 = vadd.f32 %v123, %v92
  %v141 = vadd.f32 %v128, %v93
  %v142 = vadd.f32 %v133, %v94
  %v143 = vld [vmem:[%s0 + $0x1] sm:$0x1]
  %144 = vset.pattern.permute.xlu0 1
  %145 = vperm.xlu0 %144, %v34
  %v146 = vpop.permute.xlu0 %145
  %148 = vset.pattern.permute.xlu0 1
  %149 = vperm.xlu0 %148, %v35
  %v150 = vpop.permute.xlu0 %149
  %152 = vset.pattern.permute.xlu0 1
  %153 = vperm.xlu0 %152, %v36
  %v154 = vpop.permute.xlu0 %153
  %156 = vset.pattern.permute.xlu0 1
  %157 = vperm.xlu0 %156, %v37
  %v158 = vpop.permute.xlu0 %157
  %160 = vset.pattern.permute.xlu0 1
  %161 = vperm.xlu0 %160, %v38
  %v162 = vpop.permute.xlu0 %161
  %164 = vset.pattern.permute.xlu0 1
  %165 = vperm.xlu0 %164, %v39
  %v166 = vpop.permute.xlu0 %165
  %168 = vset.pattern.permute.xlu0 1
  %169 = vperm.xlu0 %168, %v40
  %v170 = vpop.permute.xlu0 %169
  %172 = vset.pattern.permute.xlu0 1
  %173 = vperm.xlu0 %172, %v41
  %v174 = vpop.permute.xlu0 %173
  %v176 = vlaneseq
  %v177 = vshrl.u32 %v176, 7
  %v178 = vsub.s32 0, %v177
  %v179 = vrot.slane %v143, %v178
  %v180 = vmul.f32 %v146, %v179
  %v181 = vmul.f32 %v150, %v179
  %v182 = vmul.f32 %v154, %v179
  %v183 = vmul.f32 %v158, %v179
  %v184 = vmul.f32 %v162, %v179
  %v185 = vmul.f32 %v166, %v179
  %v186 = vmul.f32 %v170, %v179
  %v187 = vmul.f32 %v174, %v179
  %v188 = vadd.f32 %v135, %v180
  %v189 = vadd.f32 %v136, %v181
  %v190 = vadd.f32 %v137, %v182
  %v191 = vadd.f32 %v138, %v183
  %v192 = vadd.f32 %v139, %v184
  %v193 = vadd.f32 %v140, %v185
  %v194 = vadd.f32 %v141, %v186
  %v195 = vadd.f32 %v142, %v187
  %v196 = vmax.f32 %v188, 0.0
  %v197 = vmax.f32 %v189, 0.0
  %v198 = vmax.f32 %v190, 0.0
  %v199 = vmax.f32 %v191, 0.0
  %v200 = vmax.f32 %v192, 0.0
  %v201 = vmax.f32 %v193, 0.0
  %v202 = vmax.f32 %v194, 0.0
  %v203 = vmax.f32 %v195, 0.0
  %v204 = vmul.f32 %v196, %v196
  %v205 = vmul.f32 %v197, %v197
  %v206 = vmul.f32 %v198, %v198
  %v207 = vmul.f32 %v199, %v199
  %v208 = vmul.f32 %v200, %v200
  %v209 = vmul.f32 %v201, %v201
  %v210 = vmul.f32 %v202, %v202
  %v211 = vmul.f32 %v203, %v203
  %v212 = vmul.f32 %v204, %v204
  %v213 = vmul.f32 %v205, %v205
  %v214 = vmul.f32 %v206, %v206
  %v215 = vmul.f32 %v207, %v207
  %v216 = vmul.f32 %v208, %v208
  %v217 = vmul.f32 %v209, %v209
  %v218 = vmul.f32 %v210, %v210
  %v219 = vmul.f32 %v211, %v211
  %v220 = vld [vmem:[%s3] sm:$0xff]
  %v221 = vld [vmem:[%s3 + $0x8] sm:$0xff]
  %v222 = vld [vmem:[%s3 + $0x10] sm:$0xff]
  %v223 = vld [vmem:[%s3 + $0x18] sm:$0xff]
  %v224 = vld [vmem:[%s3 + $0x20] sm:$0xff]
  %v225 = vld [vmem:[%s3 + $0x28] sm:$0xff]
  %v226 = vld [vmem:[%s3 + $0x30] sm:$0xff]
  %v227 = vld [vmem:[%s3 + $0x38] sm:$0xff]
  %v228 = vld [vmem:[%s3 + $0x40] sm:$0xff]
  %v229 = vld [vmem:[%s3 + $0x48] sm:$0xff]
  %v230 = vld [vmem:[%s3 + $0x50] sm:$0xff]
  %v231 = vld [vmem:[%s3 + $0x58] sm:$0xff]
  %v232 = vld [vmem:[%s3 + $0x60] sm:$0xff]
  %v233 = vld [vmem:[%s3 + $0x68] sm:$0xff]
  %v234 = vld [vmem:[%s3 + $0x70] sm:$0xff]
  %v235 = vld [vmem:[%s3 + $0x78] sm:$0xff]
  %v236 = vld [vmem:[%s4] sm:$0xff]
  %v237 = vld [vmem:[%s4 + $0x8] sm:$0xff]
  %v238 = vld [vmem:[%s4 + $0x10] sm:$0xff]
  %v239 = vld [vmem:[%s4 + $0x18] sm:$0xff]
  %v240 = vld [vmem:[%s4 + $0x20] sm:$0xff]
  %v241 = vld [vmem:[%s4 + $0x28] sm:$0xff]
  %v242 = vld [vmem:[%s4 + $0x30] sm:$0xff]
  %v243 = vld [vmem:[%s4 + $0x38] sm:$0xff]
  %v244 = vld [vmem:[%s4 + $0x40] sm:$0xff]
  %v245 = vld [vmem:[%s4 + $0x48] sm:$0xff]
  %v246 = vld [vmem:[%s4 + $0x50] sm:$0xff]
  %v247 = vld [vmem:[%s4 + $0x58] sm:$0xff]
  %v248 = vld [vmem:[%s4 + $0x60] sm:$0xff]
  %v249 = vld [vmem:[%s4 + $0x68] sm:$0xff]
  %v250 = vld [vmem:[%s4 + $0x70] sm:$0xff]
  %v251 = vld [vmem:[%s4 + $0x78] sm:$0xff]
  %253 = vset.pattern.permute.xlu0 0
  %254 = vperm.xlu0 %253, %v236
  %v255 = vpop.permute.xlu0 %254
  %258 = vset.pattern.permute.xlu0 0
  %259 = vperm.xlu0 %258, %v237
  %v260 = vpop.permute.xlu0 %259
  %263 = vset.pattern.permute.xlu0 0
  %264 = vperm.xlu0 %263, %v238
  %v265 = vpop.permute.xlu0 %264
  %268 = vset.pattern.permute.xlu0 0
  %269 = vperm.xlu0 %268, %v239
  %v270 = vpop.permute.xlu0 %269
  %273 = vset.pattern.permute.xlu0 0
  %274 = vperm.xlu0 %273, %v240
  %v275 = vpop.permute.xlu0 %274
  %278 = vset.pattern.permute.xlu0 0
  %279 = vperm.xlu0 %278, %v241
  %v280 = vpop.permute.xlu0 %279
  %283 = vset.pattern.permute.xlu0 0
  %284 = vperm.xlu0 %283, %v242
  %v285 = vpop.permute.xlu0 %284
  %288 = vset.pattern.permute.xlu0 0
  %289 = vperm.xlu0 %288, %v243
  %v290 = vpop.permute.xlu0 %289
  %293 = vset.pattern.permute.xlu0 0
  %294 = vperm.xlu0 %293, %v244
  %v295 = vpop.permute.xlu0 %294
  %298 = vset.pattern.permute.xlu0 0
  %299 = vperm.xlu0 %298, %v245
  %v300 = vpop.permute.xlu0 %299
  %303 = vset.pattern.permute.xlu0 0
  %304 = vperm.xlu0 %303, %v246
  %v305 = vpop.permute.xlu0 %304
  %308 = vset.pattern.permute.xlu0 0
  %309 = vperm.xlu0 %308, %v247
  %v310 = vpop.permute.xlu0 %309
  %313 = vset.pattern.permute.xlu0 0
  %314 = vperm.xlu0 %313, %v248
  %v315 = vpop.permute.xlu0 %314
  %318 = vset.pattern.permute.xlu0 0
  %319 = vperm.xlu0 %318, %v249
  %v320 = vpop.permute.xlu0 %319
  %323 = vset.pattern.permute.xlu0 0
  %324 = vperm.xlu0 %323, %v250
  %v325 = vpop.permute.xlu0 %324
  %328 = vset.pattern.permute.xlu0 0
  %329 = vperm.xlu0 %328, %v251
  %v330 = vpop.permute.xlu0 %329
  %vm332 = vcmask 523264
  %v334 = vsel %vm332, %v220, 0
  %v337 = vsel %vm332, %v221, 0
  %v340 = vsel %vm332, %v222, 0
  %v343 = vsel %vm332, %v223, 0
  %v346 = vsel %vm332, %v224, 0
  %v349 = vsel %vm332, %v225, 0
  %v352 = vsel %vm332, %v226, 0
  %v355 = vsel %vm332, %v227, 0
  %v358 = vsel %vm332, %v228, 0
  %v361 = vsel %vm332, %v229, 0
  %v364 = vsel %vm332, %v230, 0
  %v367 = vsel %vm332, %v231, 0
  %v370 = vsel %vm332, %v232, 0
  %v373 = vsel %vm332, %v233, 0
  %v376 = vsel %vm332, %v234, 0
  %v379 = vsel %vm332, %v235, 0
  %381 = vmatprep.subr.mxu0 0.0
  %382 = vmatpush1.msra.mxu0 0.0
  %383 = vmatprep.subr.mxu0 0.0
  %384 = vmatpush1.msra.mxu0 0.0
  %385 = vmatprep.subr.mxu0 0.0
  %386 = vmatpush1.msra.mxu0 0.0
  %387 = vmatprep.subr.mxu0 0.0
  %388 = vmatpush1.msra.mxu0 0.0
  %389 = vmatprep.subr.mxu0 0.0
  %390 = vmatpush1.msra.mxu0 0.0
  %391 = vmatprep.subr.mxu0 0.0
  %392 = vmatpush1.msra.mxu0 0.0
  %393 = vmatprep.subr.mxu0 0.0
  %394 = vmatpush1.msra.mxu0 0.0
  %395 = vmatprep.subr.mxu0 0.0
  %396 = vmatpush1.msra.mxu0 0.0
  %397 = vmatprep.subr.mxu0 0.0
  %398 = vmatpush1.msra.mxu0 %v219
  %399 = vmatprep.subr.mxu0 0.0
  %400 = vmatpush1.msra.mxu0 %v218
  %401 = vmatprep.subr.mxu0 0.0
  %402 = vmatpush1.msra.mxu0 %v217
  %403 = vmatprep.subr.mxu0 0.0
  %404 = vmatpush1.msra.mxu0 %v216
  %405 = vmatprep.subr.mxu0 0.0
  %406 = vmatpush1.msra.mxu0 %v215
  %407 = vmatprep.subr.mxu0 0.0
  %408 = vmatpush1.msra.mxu0 %v214
  %409 = vmatprep.subr.mxu0 0.0
  %410 = vmatpush1.msra.mxu0 %v213
  %411 = vmatprep.subr.mxu0 0.0
  %412 = vmatpush1.msra.mxu0 %v212
  %413 = vmatprep.subr.mxu0 0.0
  %414 = vmatpush2.msra.mxu0 0.0
  %415 = vmatprep.subr.mxu0 0.0
  %416 = vmatpush2.msra.mxu0 0.0
  %417 = vmatprep.subr.mxu0 0.0
  %418 = vmatpush2.msra.mxu0 0.0
  %419 = vmatprep.subr.mxu0 0.0
  %420 = vmatpush2.msra.mxu0 0.0
  %421 = vmatprep.subr.mxu0 0.0
  %422 = vmatpush2.msra.mxu0 0.0
  %423 = vmatprep.subr.mxu0 0.0
  %424 = vmatpush2.msra.mxu0 0.0
  %425 = vmatprep.subr.mxu0 0.0
  %426 = vmatpush2.msra.mxu0 0.0
  %427 = vmatprep.subr.mxu0 0.0
  %428 = vmatpush2.msra.mxu0 0.0
  %429 = vmatprep.subr.mxu0 0.0
  %430 = vmatpush2.msra.mxu0 0.0
  %431 = vmatprep.subr.mxu0 0.0
  %432 = vmatpush2.msra.mxu0 0.0
  %433 = vmatprep.subr.mxu0 0.0
  %434 = vmatpush2.msra.mxu0 0.0
  %435 = vmatprep.subr.mxu0 0.0
  %436 = vmatpush2.msra.mxu0 0.0
  %437 = vmatprep.subr.mxu0 0.0
  %438 = vmatpush2.msra.mxu0 0.0
  %439 = vmatprep.subr.mxu0 0.0
  %440 = vmatpush2.msra.mxu0 0.0
  %441 = vmatprep.subr.mxu0 0.0
  %442 = vmatpush2.msra.mxu0 0.0
  %443 = vmatprep.subr.mxu0 0.0
  %444 = vmatpush2.msra.mxu0 0.0
  %445 = vmatprep.mubr.f32.mxu0 0.0
  %446 = vmatmul.mubr.f32.gmra.mxu0 %v334
  %v447 = vpop.f32.mrf.mxu0
  %v448 = vadd.f32 %v255, %v447
  %v449 = vpop.f32.mrf.mxu0
  %450 = vmatprep.mubr.f32.mxu0 0.0
  %451 = vmatmul.mubr.f32.gmra.mxu0 %v337
  %v452 = vpop.f32.mrf.mxu0
  %v453 = vadd.f32 %v260, %v452
  %v454 = vpop.f32.mrf.mxu0
  %455 = vmatprep.mubr.f32.mxu0 0.0
  %456 = vmatmul.mubr.f32.gmra.mxu0 %v340
  %v457 = vpop.f32.mrf.mxu0
  %v458 = vadd.f32 %v265, %v457
  %v459 = vpop.f32.mrf.mxu0
  %460 = vmatprep.mubr.f32.mxu0 0.0
  %461 = vmatmul.mubr.f32.gmra.mxu0 %v343
  %v462 = vpop.f32.mrf.mxu0
  %v463 = vadd.f32 %v270, %v462
  %v464 = vpop.f32.mrf.mxu0
  %465 = vmatprep.mubr.f32.mxu0 0.0
  %466 = vmatmul.mubr.f32.gmra.mxu0 %v346
  %v467 = vpop.f32.mrf.mxu0
  %v468 = vadd.f32 %v275, %v467
  %v469 = vpop.f32.mrf.mxu0
  %470 = vmatprep.mubr.f32.mxu0 0.0
  %471 = vmatmul.mubr.f32.gmra.mxu0 %v349
  %v472 = vpop.f32.mrf.mxu0
  %v473 = vadd.f32 %v280, %v472
  %v474 = vpop.f32.mrf.mxu0
  %475 = vmatprep.mubr.f32.mxu0 0.0
  %476 = vmatmul.mubr.f32.gmra.mxu0 %v352
  %v477 = vpop.f32.mrf.mxu0
  %v478 = vadd.f32 %v285, %v477
  %v479 = vpop.f32.mrf.mxu0
  %480 = vmatprep.mubr.f32.mxu0 0.0
  %481 = vmatmul.mubr.f32.gmra.mxu0 %v355
  %v482 = vpop.f32.mrf.mxu0
  %v483 = vadd.f32 %v290, %v482
  %v484 = vpop.f32.mrf.mxu0
  %485 = vmatprep.mubr.f32.mxu0 0.0
  %486 = vmatmul.mubr.f32.gmra.mxu0 %v358
  %v487 = vpop.f32.mrf.mxu0
  %v488 = vadd.f32 %v295, %v487
  %v489 = vpop.f32.mrf.mxu0
  %490 = vmatprep.mubr.f32.mxu0 0.0
  %491 = vmatmul.mubr.f32.gmra.mxu0 %v361
  %v492 = vpop.f32.mrf.mxu0
  %v493 = vadd.f32 %v300, %v492
  %v494 = vpop.f32.mrf.mxu0
  %495 = vmatprep.mubr.f32.mxu0 0.0
  %496 = vmatmul.mubr.f32.gmra.mxu0 %v364
  %v497 = vpop.f32.mrf.mxu0
  %v498 = vadd.f32 %v305, %v497
  %v499 = vpop.f32.mrf.mxu0
  %500 = vmatprep.mubr.f32.mxu0 0.0
  %501 = vmatmul.mubr.f32.gmra.mxu0 %v367
  %v502 = vpop.f32.mrf.mxu0
  %v503 = vadd.f32 %v310, %v502
  %v504 = vpop.f32.mrf.mxu0
  %505 = vmatprep.mubr.f32.mxu0 0.0
  %506 = vmatmul.mubr.f32.gmra.mxu0 %v370
  %v507 = vpop.f32.mrf.mxu0
  %v508 = vadd.f32 %v315, %v507
  %v509 = vpop.f32.mrf.mxu0
  %510 = vmatprep.mubr.f32.mxu0 0.0
  %511 = vmatmul.mubr.f32.gmra.mxu0 %v373
  %v512 = vpop.f32.mrf.mxu0
  %v513 = vadd.f32 %v320, %v512
  %v514 = vpop.f32.mrf.mxu0
  %515 = vmatprep.mubr.f32.mxu0 0.0
  %516 = vmatmul.mubr.f32.gmra.mxu0 %v376
  %v517 = vpop.f32.mrf.mxu0
  %v518 = vadd.f32 %v325, %v517
  %v519 = vpop.f32.mrf.mxu0
  %520 = vmatprep.mubr.f32.mxu0 0.0
  %521 = vmatmul.mubr.f32.gmra.mxu0 %v379
  %v522 = vpop.f32.mrf.mxu0
  %v523 = vadd.f32 %v330, %v522
  %v524 = vpop.f32.mrf.mxu0
  %525 = vdwg.mxu0
  %v526 = vmax.f32 %v448, 0.0
  %v527 = vmax.f32 %v453, 0.0
  %v528 = vmax.f32 %v458, 0.0
  %v529 = vmax.f32 %v463, 0.0
  %v530 = vmax.f32 %v468, 0.0
  %v531 = vmax.f32 %v473, 0.0
  %v532 = vmax.f32 %v478, 0.0
  %v533 = vmax.f32 %v483, 0.0
  %v534 = vmax.f32 %v488, 0.0
  %v535 = vmax.f32 %v493, 0.0
  %v536 = vmax.f32 %v498, 0.0
  %v537 = vmax.f32 %v503, 0.0
  %v538 = vmax.f32 %v508, 0.0
  %v539 = vmax.f32 %v513, 0.0
  %v540 = vmax.f32 %v518, 0.0
  %v541 = vmax.f32 %v523, 0.0
  %v542 = vmul.f32 %v526, %v526
  %v543 = vmul.f32 %v527, %v527
  %v544 = vmul.f32 %v528, %v528
  %v545 = vmul.f32 %v529, %v529
  %v546 = vmul.f32 %v530, %v530
  %v547 = vmul.f32 %v531, %v531
  %v548 = vmul.f32 %v532, %v532
  %v549 = vmul.f32 %v533, %v533
  %v550 = vmul.f32 %v534, %v534
  %v551 = vmul.f32 %v535, %v535
  %v552 = vmul.f32 %v536, %v536
  %v553 = vmul.f32 %v537, %v537
  %v554 = vmul.f32 %v538, %v538
  %v555 = vmul.f32 %v539, %v539
  %v556 = vmul.f32 %v540, %v540
  %v557 = vmul.f32 %v541, %v541
  %v558 = vld [vmem:[%s5] sm:$0xff]
  %v559 = vld [vmem:[%s6] sm:$0xff]
  %561 = vset.pattern.permute.xlu0 0
  %562 = vperm.xlu0 %561, %v559
  %v563 = vpop.permute.xlu0 %562
  %565 = vmatprep.subr.mxu0 0.0
  %566 = vmatpush1.msra.mxu0 %v557
  %567 = vmatprep.subr.mxu0 0.0
  %568 = vmatpush1.msra.mxu0 %v556
  %569 = vmatprep.subr.mxu0 0.0
  %570 = vmatpush1.msra.mxu0 %v555
  %571 = vmatprep.subr.mxu0 0.0
  %572 = vmatpush1.msra.mxu0 %v554
  %573 = vmatprep.subr.mxu0 0.0
  %574 = vmatpush1.msra.mxu0 %v553
  %575 = vmatprep.subr.mxu0 0.0
  %576 = vmatpush1.msra.mxu0 %v552
  %577 = vmatprep.subr.mxu0 0.0
  %578 = vmatpush1.msra.mxu0 %v551
  %579 = vmatprep.subr.mxu0 0.0
  %580 = vmatpush1.msra.mxu0 %v550
  %581 = vmatprep.subr.mxu0 0.0
  %582 = vmatpush1.msra.mxu0 %v549
  %583 = vmatprep.subr.mxu0 0.0
  %584 = vmatpush1.msra.mxu0 %v548
  %585 = vmatprep.subr.mxu0 0.0
  %586 = vmatpush1.msra.mxu0 %v547
  %587 = vmatprep.subr.mxu0 0.0
  %588 = vmatpush1.msra.mxu0 %v546
  %589 = vmatprep.subr.mxu0 0.0
  %590 = vmatpush1.msra.mxu0 %v545
  %591 = vmatprep.subr.mxu0 0.0
  %592 = vmatpush1.msra.mxu0 %v544
  %593 = vmatprep.subr.mxu0 0.0
  %594 = vmatpush1.msra.mxu0 %v543
  %595 = vmatprep.subr.mxu0 0.0
  %596 = vmatpush1.msra.mxu0 %v542
  %597 = vmatprep.subr.mxu0 0.0
  %598 = vmatpush2.msra.mxu0 0.0
  %599 = vmatprep.subr.mxu0 0.0
  %600 = vmatpush2.msra.mxu0 0.0
  %601 = vmatprep.subr.mxu0 0.0
  %602 = vmatpush2.msra.mxu0 0.0
  %603 = vmatprep.subr.mxu0 0.0
  %604 = vmatpush2.msra.mxu0 0.0
  %605 = vmatprep.subr.mxu0 0.0
  %606 = vmatpush2.msra.mxu0 0.0
  %607 = vmatprep.subr.mxu0 0.0
  %608 = vmatpush2.msra.mxu0 0.0
  %609 = vmatprep.subr.mxu0 0.0
  %610 = vmatpush2.msra.mxu0 0.0
  %611 = vmatprep.subr.mxu0 0.0
  %612 = vmatpush2.msra.mxu0 0.0
  %613 = vmatprep.subr.mxu0 0.0
  %614 = vmatpush2.msra.mxu0 0.0
  %615 = vmatprep.subr.mxu0 0.0
  %616 = vmatpush2.msra.mxu0 0.0
  %617 = vmatprep.subr.mxu0 0.0
  %618 = vmatpush2.msra.mxu0 0.0
  %619 = vmatprep.subr.mxu0 0.0
  %620 = vmatpush2.msra.mxu0 0.0
  %621 = vmatprep.subr.mxu0 0.0
  %622 = vmatpush2.msra.mxu0 0.0
  %623 = vmatprep.subr.mxu0 0.0
  %624 = vmatpush2.msra.mxu0 0.0
  %625 = vmatprep.subr.mxu0 0.0
  %626 = vmatpush2.msra.mxu0 0.0
  %627 = vmatprep.subr.mxu0 0.0
  %628 = vmatpush2.msra.mxu0 0.0
  %629 = vmatprep.mubr.f32.mxu0 0.0
  %630 = vmatmul.mubr.f32.gmra.mxu0 %v558
  %v631 = vpop.f32.mrf.mxu0
  %v632 = vadd.f32 %v563, %v631
  %v633 = vpop.f32.mrf.mxu0
  %634 = vdwg.mxu0
  %635 = vst [vmem:[%s7] sm:$0xff] %v632
  // Predicated region
  $region30: #{neural_network_forward.1} parent=0 // pred_check
    _
  $region31: #{neural_network_forward.1} parent=0 // pred_check_branch
    %637 = sbr.rel (0) target = $region33
  $region32: #{neural_network_forward.1} parent=0 // pred_region
    _
  $region33: #{neural_network_forward.1} parent=0 // pred_fallthru
    _
  // Predicated region
  $region34: #{neural_network_forward.1} parent=0 // pred_check
    _
  $region35: #{neural_network_forward.1} parent=0 // pred_check_branch
    %639 = sbr.rel (0) target = $region37
  $region36: #{neural_network_forward.1} parent=0 // pred_region
    _
  $region37: #{neural_network_forward.1} parent=0 // pred_fallthru
    _

</llo_original>
